<compile_context>
chip_gen: v5e
topology: v5e:2x2
jax: 0.10.0
libtpu: 0.0.40
codegen_flags: <defaults>
</compile_context>

<pallas_src>
import math
from typing import List

import jax
import jax.numpy as jnp
from jax.experimental import pallas as pl
from jax.experimental.pallas import tpu as pltpu


def _round_up(x: int, m: int) -> int:
    return ((x + m - 1) // m) * m


def _pad2d(x, rows, cols):
    return jnp.pad(x, ((0, rows - x.shape[0]), (0, cols - x.shape[1])))


def _fused_dgca_kernel(a_ref, x_ref, w_ref, out_ref, acc_ref):
    """One grid step: acc += relu(A_tile @ (X @ W)) for the current relation.

    Grid = (row_tile i, relation rel). rel is the innermost (reduction) axis;
    the f32 accumulator lives in VMEM scratch and is initialized / finalized
    with pl.when, so the output tile touches HBM exactly once.
    """
    rel = pl.program_id(1)
    last = pl.num_programs(1) - 1

    @pl.when(rel == 0)
    def _init():
        acc_ref[...] = jnp.zeros_like(acc_ref)

    # X @ W : (Npad, Dmax) @ (Dmax, Fpad) -> f32 on the MXU.
    xw = jnp.dot(x_ref[0], w_ref[0], preferred_element_type=jnp.float32)
    # A_tile @ (X @ W) : (TM, Npad) @ (Npad, Fpad) -> f32 accumulate.
    axw = jnp.dot(a_ref[0], xw.astype(a_ref.dtype),
                  preferred_element_type=jnp.float32)
    acc_ref[...] += jnp.maximum(axw, 0.0)

    @pl.when(rel == last)
    def _finalize():
        acc = acc_ref[...]
        # Row-wise L2 normalize == torch.nn.functional.normalize(p=2, dim=1).
        # rsqrt runs on the EUP slot; padding columns are exactly zero so the
        # norm over Fpad columns equals the norm over the real F columns.
        sumsq = jnp.sum(acc * acc, axis=1, keepdims=True)
        inv = jax.lax.rsqrt(jnp.maximum(sumsq, 1e-24))
        out_ref[...] = (acc * inv).astype(out_ref.dtype)


def fused_sparse_multi_dgca(a_stack, x_stack, w_stack, *, tm):
    """a_stack: [R, Npad, Npad], x_stack: [R, Npad, Dmax], w_stack: [R, Dmax, Fpad].

    Returns the accumulated, row-L2-normalized output, shape [Npad, Fpad], f32.
    """
    r, n_pad, _ = a_stack.shape
    d_max = x_stack.shape[2]
    f_pad = w_stack.shape[2]
    assert n_pad % tm == 0

    itemsize = jnp.dtype(a_stack.dtype).itemsize
    vmem_bytes = (
        2 * tm * n_pad * itemsize          # A tiles (double-buffered)
        + 2 * n_pad * d_max * itemsize     # X (double-buffered)
        + 2 * d_max * f_pad * itemsize     # W (double-buffered)
        + 2 * tm * f_pad * 4               # output tiles (double-buffered)
        + tm * f_pad * 4                   # f32 accumulator scratch
    )
    # Generous margin, floored at a comfortable scoped limit, capped under
    # v7x's 64 MiB physical VMEM.
    vmem_limit = min(max(2 * vmem_bytes, 32 << 20), 64 << 20)

    return pl.pallas_call(
        _fused_dgca_kernel,
        out_shape=jax.ShapeDtypeStruct((n_pad, f_pad), jnp.float32),
        grid_spec=pltpu.PrefetchScalarGridSpec(
            num_scalar_prefetch=0,
            grid=(n_pad // tm, r),
            in_specs=[
                pl.BlockSpec((1, tm, n_pad), lambda i, k: (k, i, 0)),     # A
                pl.BlockSpec((1, n_pad, d_max), lambda i, k: (k, 0, 0)),  # X
                pl.BlockSpec((1, d_max, f_pad), lambda i, k: (k, 0, 0)),  # W
            ],
            out_specs=pl.BlockSpec((tm, f_pad), lambda i, k: (i, 0)),
            scratch_shapes=[pltpu.VMEM((tm, f_pad), jnp.float32)],
        ),
        compiler_params=pltpu.CompilerParams(
            dimension_semantics=("parallel", "arbitrary"),
            vmem_limit_bytes=vmem_limit,
        ),
    )(a_stack, x_stack, w_stack)


def init_glorot(key, in_dim, out_dim):
    """Glorot-uniform init (same formula as decagon's init_glorot)."""
    limit = math.sqrt(6.0 / (in_dim + out_dim))
    return jax.random.uniform(key, (in_dim, out_dim), dtype=jnp.float32,
                              minval=-limit, maxval=limit)


class SparseMultiDGCA:
    """JAX/Pallas re-implementation of decagon's SparseMultiDGCA (keep_prob=1.0)."""

    ROW_TILE_TARGET = 256  # multiple of 128 -> valid MXU tile on v5e/v6e/v7x

    def __init__(self, input_dims: List[int], output_dim: int,
                 adjacency_matrices, keep_prob: float = 1.0, key=None,
                 compute_dtype=jnp.bfloat16):
        if len(input_dims) != len(adjacency_matrices):
            raise ValueError("input_dim must have the same length as adjacency_matrices")
        if keep_prob != 1.0:
            # TODO(synk): dropout_sparse for keep_prob < 1.0 (stateless PRNG mask via
            # pltpu.prng_seed / prng_random_bits inside the kernel) is not implemented.
            raise NotImplementedError("keep_prob < 1.0 is not supported")
        if key is None:
            key = jax.random.PRNGKey(0)

        self.input_dims = list(input_dims)
        self.output_dim = output_dim
        self.keep_prob = keep_prob
        self.compute_dtype = compute_dtype

        n = adjacency_matrices[0].shape[0]
        self.n = n
        self.tm = min(self.ROW_TILE_TARGET, _round_up(n, 8))
        self.n_pad = _round_up(n, self.tm)
        self.d_max = _round_up(max(self.input_dims), 128)
        self.f_pad = _round_up(output_dim, 128)

        # Glorot weights, zero-padded to [Dmax, Fpad] and stacked over relations.
        keys = jax.random.split(key, len(input_dims))
        self.weights = [init_glorot(k, d, output_dim)
                        for k, d in zip(keys, input_dims)]
        self.w_stack = jnp.stack(
            [_pad2d(w, self.d_max, self.f_pad) for w in self.weights]
        ).astype(compute_dtype)

        # Adjacency matrices (densified sparse), zero-padded to [Npad, Npad].
        self.a_stack = jnp.stack(
            [_pad2d(a.astype(jnp.float32), self.n_pad, self.n_pad)
             for a in adjacency_matrices]
        ).astype(compute_dtype)

    def __call__(self, xs):
        if not isinstance(xs, list):
            raise ValueError("x must be a list of tensors")
        x_stack = jnp.stack(
            [_pad2d(x.astype(jnp.float32), self.n_pad, self.d_max) for x in xs]
        ).astype(self.compute_dtype)
        out = fused_sparse_multi_dgca(self.a_stack, x_stack, self.w_stack,
                                      tm=self.tm)
        return out[: self.n, : self.output_dim]


def _reference_matched(a_stack, x_stack, w_stack, n, f):
    """Pure-JAX reference with the same dtypes / op ordering as the kernel."""
    out = jnp.zeros((a_stack.shape[1], w_stack.shape[2]), jnp.float32)
    for r in range(a_stack.shape[0]):
        xw = jnp.dot(x_stack[r], w_stack[r], preferred_element_type=jnp.float32)
        axw = jnp.dot(a_stack[r], xw.astype(a_stack.dtype),
                      preferred_element_type=jnp.float32)
        out = out + jnp.maximum(axw, 0.0)
    sumsq = jnp.sum(out * out, axis=1, keepdims=True)
    out = out * jax.lax.rsqrt(jnp.maximum(sumsq, 1e-24))
    return out[:n, :f]


def _reference_f32(xs, adjs, ws):
    """Original float32 semantics (unpadded, un-cast) reference."""
    out = jnp.zeros((xs[0].shape[0], ws[0].shape[1]), dtype=jnp.float32)
    for x, a, w in zip(xs, adjs, ws):
        out = out + jax.nn.relu(a @ (x @ w))
    norm = jnp.sqrt(jnp.sum(out * out, axis=1, keepdims=True))
    return out / jnp.maximum(norm, 1e-12)


if __name__ == "__main__":
    key = jax.random.PRNGKey(0)
    N = 64                 # number of graph nodes
    OUT_DIM = 32           # output feature dim
    INPUT_DIMS = [16, 48]  # per-relation input feature dims

    k_adj, k_x, k_w = jax.random.split(key, 3)
    adj_keys = jax.random.split(k_adj, len(INPUT_DIMS))
    x_keys = jax.random.split(k_x, len(INPUT_DIMS))

    # Sparse-ish adjacency matrices (densified), deterministic.
    adjs = []
    for ak in adj_keys:
        a_dense = jax.random.uniform(ak, (N, N), dtype=jnp.float32)
        adjs.append(jnp.where(a_dense > 0.8, a_dense, 0.0))

    # Sparse-ish node feature matrices (densified), deterministic.
    xs = []
    for xk, d in zip(x_keys, INPUT_DIMS):
        x_dense = jax.random.normal(xk, (N, d), dtype=jnp.float32)
        xs.append(jnp.where(jnp.abs(x_dense) > 0.5, x_dense, 0.0))

    model = SparseMultiDGCA(INPUT_DIMS, OUT_DIM, adjs, keep_prob=1.0, key=k_w)

    out = jax.block_until_ready(model(xs))
    assert out.shape == (N, OUT_DIM)

    # Tight check vs a reference using the same bf16 inputs / op ordering.
    x_stack = jnp.stack(
        [_pad2d(x, model.n_pad, model.d_max) for x in xs]
    ).astype(model.compute_dtype)
    ref = _reference_matched(model.a_stack, x_stack, model.w_stack, N, OUT_DIM)
    assert jnp.allclose(out, ref, atol=2e-3, rtol=2e-3), \
        "mismatch vs matched-dtype reference"

    # Loose check vs the original float32 semantics (bf16 inputs introduce
    # ~0.4% relative error; outputs are L2-normalized so |.| <= 1).
    ref32 = _reference_f32(xs, adjs, model.weights)
    assert jnp.allclose(out, ref32, atol=5e-2), "mismatch vs f32 reference"

    print("KERNEL_OK")
</pallas_src>

<mosaic_0001>
module attributes {stable_mosaic.version = 11 : i64} {
  func.func @_fused_dgca_kernel(%arg0: i32, %arg1: i32, %arg2: memref<1x64x64xbf16, #tpu.memory_space<vmem>>, %arg3: memref<1x64x128xbf16, #tpu.memory_space<vmem>>, %arg4: memref<1x128x128xbf16, #tpu.memory_space<vmem>>, %arg5: memref<64x128xf32, #tpu.memory_space<vmem>>, %arg6: memref<64x128xf32, #tpu.memory_space<vmem>>) attributes {dimension_semantics = [#tpu.dimension_semantics<parallel>, #tpu.dimension_semantics<arbitrary>], iteration_bounds = array<i64: 1, 2>, scalar_prefetch = 0 : i64, scratch_operands = 1 : i64, tpu.core_type = #tpu.core_type<tc>, window_params = [{transform_indices = @transform_0, window_bounds = array<i64: 1, 64, 64>}, {transform_indices = @transform_1, window_bounds = array<i64: 1, 64, 128>}, {transform_indices = @transform_2, window_bounds = array<i64: 1, 128, 128>}, {transform_indices = @transform_3, window_bounds = array<i64: 64, 128>}]} {
    %c0_i32 = arith.constant 0 : i32
    %0 = arith.cmpi eq, %arg1, %c0_i32 : i32
    %1 = arith.extui %0 : i1 to i32
    %c0_i32_0 = arith.constant 0 : i32
    %2 = arith.cmpi ne, %1, %c0_i32_0 : i32
    scf.if %2 {
      %cst_16 = arith.constant 0.000000e+00 : f32
      %20 = vector.broadcast %cst_16 : f32 to vector<64x128xf32>
      %c0_17 = arith.constant 0 : index
      %c0_18 = arith.constant 0 : index
      %21 = vector.load %arg6[%c0_17, %c0_18] : memref<64x128xf32, #tpu.memory_space<vmem>>, vector<64x128xf32>
      tpu.vector_store %arg6[%c0_17, %c0_18], %20 {strides = array<i32>} : memref<64x128xf32, #tpu.memory_space<vmem>>, vector<64x128xf32>,
    } else {
    }
    %c0 = arith.constant 0 : index
    %c0_1 = arith.constant 0 : index
    %c0_2 = arith.constant 0 : index
    %3 = vector.load %arg3[%c0, %c0_1, %c0_2] : memref<1x64x128xbf16, #tpu.memory_space<vmem>>, vector<1x64x128xbf16>
    %4 = vector.shape_cast %3 : vector<1x64x128xbf16> to vector<64x128xbf16>
    %c0_3 = arith.constant 0 : index
    %c0_4 = arith.constant 0 : index
    %c0_5 = arith.constant 0 : index
    %5 = vector.load %arg4[%c0_3, %c0_4, %c0_5] : memref<1x128x128xbf16, #tpu.memory_space<vmem>>, vector<1x128x128xbf16>
    %6 = vector.shape_cast %5 : vector<1x128x128xbf16> to vector<128x128xbf16>
    %cst = arith.constant dense<0.000000e+00> : vector<64x128xf32>
    %7 = tpu.matmul %4, %6, %cst {dimension_numbers = #tpu.dot_dimension_numbers<[1], [0], [0], [1], [0, 0, 1, 1], [], []>} : vector<64x128xbf16>, vector<128x128xbf16>, vector<64x128xf32> -> vector<64x128xf32>
    %c0_6 = arith.constant 0 : index
    %c0_7 = arith.constant 0 : index
    %c0_8 = arith.constant 0 : index
    %8 = vector.load %arg2[%c0_6, %c0_7, %c0_8] : memref<1x64x64xbf16, #tpu.memory_space<vmem>>, vector<1x64x64xbf16>
    %9 = vector.shape_cast %8 : vector<1x64x64xbf16> to vector<64x64xbf16>
    %10 = arith.truncf %7 : vector<64x128xf32> to vector<64x128xbf16>
    %cst_9 = arith.constant dense<0.000000e+00> : vector<64x128xf32>
    %11 = tpu.matmul %9, %10, %cst_9 {dimension_numbers = #tpu.dot_dimension_numbers<[1], [0], [0], [1], [0, 0, 1, 1], [], []>} : vector<64x64xbf16>, vector<64x128xbf16>, vector<64x128xf32> -> vector<64x128xf32>
    %c0_10 = arith.constant 0 : index
    %c0_11 = arith.constant 0 : index
    %12 = vector.load %arg6[%c0_10, %c0_11] : memref<64x128xf32, #tpu.memory_space<vmem>>, vector<64x128xf32>
    %cst_12 = arith.constant 0.000000e+00 : f32
    %13 = vector.broadcast %cst_12 : f32 to vector<64x128xf32>
    %14 = arith.maximumf %11, %13 : vector<64x128xf32>
    %15 = arith.addf %12, %14 : vector<64x128xf32>
    %c0_13 = arith.constant 0 : index
    %c0_14 = arith.constant 0 : index
    %16 = vector.load %arg6[%c0_13, %c0_14] : memref<64x128xf32, #tpu.memory_space<vmem>>, vector<64x128xf32>
    tpu.vector_store %arg6[%c0_13, %c0_14], %15 {strides = array<i32>} : memref<64x128xf32, #tpu.memory_space<vmem>>, vector<64x128xf32>,
    %c1_i32 = arith.constant 1 : i32
    %17 = arith.cmpi eq, %arg1, %c1_i32 : i32
    %18 = arith.extui %17 : i1 to i32
    %c0_i32_15 = arith.constant 0 : i32
    %19 = arith.cmpi ne, %18, %c0_i32_15 : i32
    scf.if %19 {
      %c0_16 = arith.constant 0 : index
      %c0_17 = arith.constant 0 : index
      %20 = vector.load %arg6[%c0_16, %c0_17] : memref<64x128xf32, #tpu.memory_space<vmem>>, vector<64x128xf32>
      %21 = arith.mulf %20, %20 : vector<64x128xf32>
      %cst_18 = arith.constant dense<0.000000e+00> : vector<64xf32>
      %22 = vector.multi_reduction <add>, %21, %cst_18 [1] : vector<64x128xf32> to vector<64xf32>
      %23 = vector.shape_cast %22 : vector<64xf32> to vector<64x1xf32>
      %cst_19 = arith.constant 1.000000e-24 : f32
      %24 = vector.broadcast %cst_19 : f32 to vector<64x1xf32>
      %25 = arith.maximumf %23, %24 : vector<64x1xf32>
      %26 = math.rsqrt %25 : vector<64x1xf32>
      %27 = vector.broadcast %26 : vector<64x1xf32> to vector<64x128xf32>
      %28 = arith.mulf %20, %27 : vector<64x128xf32>
      %c0_20 = arith.constant 0 : index
      %c0_21 = arith.constant 0 : index
      %29 = vector.load %arg5[%c0_20, %c0_21] : memref<64x128xf32, #tpu.memory_space<vmem>>, vector<64x128xf32>
      tpu.vector_store %arg5[%c0_20, %c0_21], %28 {strides = array<i32>} : memref<64x128xf32, #tpu.memory_space<vmem>>, vector<64x128xf32>,
    } else {
    }
    return
  }
  func.func @transform_0(%arg0: i32, %arg1: i32) -> (i32, i32, i32) {
    %c0_i32 = arith.constant 0 : i32
    %c0_i32_0 = arith.constant 0 : i32
    return %arg1, %arg0, %c0_i32 : i32, i32, i32
  }
  func.func @transform_1(%arg0: i32, %arg1: i32) -> (i32, i32, i32) {
    %c0_i32 = arith.constant 0 : i32
    %c0_i32_0 = arith.constant 0 : i32
    %c0_i32_1 = arith.constant 0 : i32
    return %arg1, %c0_i32, %c0_i32_0 : i32, i32, i32
  }
  func.func @transform_2(%arg0: i32, %arg1: i32) -> (i32, i32, i32) {
    %c0_i32 = arith.constant 0 : i32
    %c0_i32_0 = arith.constant 0 : i32
    %c0_i32_1 = arith.constant 0 : i32
    return %arg1, %c0_i32, %c0_i32_0 : i32, i32, i32
  }
  func.func @transform_3(%arg0: i32, %arg1: i32) -> (i32, i32) {
    %c0_i32 = arith.constant 0 : i32
    %c0_i32_0 = arith.constant 0 : i32
    return %arg0, %c0_i32 : i32, i32
  }
}

</mosaic_0001>

<llo_original>
// kernel: tpu_custom_call.1
$region0: #{tpu_custom_call.1}
  #allocation0 [shape = 'u32[]', space=smem, size = 0x4, offset = 0x4, fixed_abs, tag = 'smem constant byte address 0x4 - core index']
  #allocation1 [shape = 'u32[72,128]{1,0:T(1,128)}', space=vmem, size = 0x9000, scoped, tag = 'internal scratch']
  #allocation2 [shape = 'f32[64,128]{1,0:T(8,128)}', space=vmem, size = 0x8000, scoped, tag = 'scratch operand']
  %s0 = inlined_call_operand.hbm [shape: bf16[2,64,64], index: 0, kind: input, shape index: {}]
  %s1 = inlined_call_operand.hbm [shape: bf16[2,64,128], index: 1, kind: input, shape index: {}]
  %s2 = inlined_call_operand.hbm [shape: bf16[2,128,128], index: 2, kind: input, shape index: {}]
  %s3 = inlined_call_operand.hbm [shape: f32[64,128], index: 3, kind: output, shape index: {}]
  %s4 = sld [smem:[#allocation0]]
  $region65: #{tpu_custom_call.1} parent=0
    _
  %s6 = ssub.s32 1, %s4
  %s7 = scalar_select 0, %s6, %s4
  $region1: #{tpu_custom_call.1} parent=0
    #allocation3 [shape = 'u8[32768]{0}', space=vmem, size = 0x8000, scoped, tag = 'input window, operand 0']
    #allocation4 [shape = 's32[2]{0}', space=sflag, size = 0x8, scoped, tag = 'scoped memory for tpu_custom_call.1']
    #allocation5 [shape = 's32[2]{0}', space=sflag, size = 0x8, scoped, tag = 'scoped memory for tpu_custom_call.1']
    #allocation6 [shape = 'u8[32768]{0}', space=vmem, size = 0x8000, scoped, tag = 'input window, operand 1']
    #allocation7 [shape = 's32[2]{0}', space=sflag, size = 0x8, scoped, tag = 'scoped memory for tpu_custom_call.1']
    #allocation8 [shape = 'u8[65536]{0}', space=vmem, size = 0x10000, scoped, tag = 'input window, operand 2']
    #allocation9 [shape = 'u8[32768]{0}', space=vmem, size = 0x8000, scoped, tag = 'output window, operand 0, single buffered']
    %8 = vsyncpa [#allocation4], 0
    %s9 = scalar_lea.sflag [#allocation4], 1
    %10 = vsyncpa %s9, 0
    %11 = vsyncpa [#allocation7], 0
    %s12 = scalar_lea.sflag [#allocation7], 1
    %13 = vsyncpa %s12, 0
    %14 = vsyncpa [#allocation5], 0
    loop: start=0, step=1, limit=4
    $region2: #{tpu_custom_call.1} parent=1 // loop_pre_header
      _
    $region3: #{tpu_custom_call.1} parent=1 // loop_header
      %s16 = sphi 0, %s20
      %p17 = scmp.ge.s32.totalorder %s16, 4
      %s23 = sphi 0, %s35
      %s24 = sphi 0, %s31
      %s25 = sphi 0, %s23
      %s26 = sphi 0, %s24
      %s27 = sphi 0, %s25
      %s28 = sphi 0, %s26
      %s40 = sphi 0, %s42
      %s43 = sphi 0, %s40
      %s44 = sphi 0, %s43
      %s60 = sphi 0, %s44
      %s66 = sphi 0, %s68
      %s69 = sphi 0, %s66
      %s70 = sphi 0, %s69
      %s86 = sphi 0, %s70
      %s92 = sphi 0, %s94
      %s95 = sphi 0, %s92
      %s96 = sphi 0, %s95
      %s112 = sphi 0, %s96
      %s118 = sphi 0, %s120
      %s121 = sphi 0, %s118
      %s122 = sphi 0, %s121
      %s138 = sphi 0, %s122
    $region4: #{tpu_custom_call.1} parent=1 // loop_header_branch
      %19 = sbr.rel (%p17) target = $region8
    $region5: #{tpu_custom_call.1} parent=1 // loop_body
      %s21 = ssub.s32 %s16, 1
      %s22 = ssub.s32 %s16, 2
      %s29 = sadd.s32 1, %s24
      %p30 = scmp.ge.s32.totalorder %s29, 2
      %s31 = scalar_select %p30, 0, %s29
      %s32 = sadd.s32 1, %s23
      %s33 = scalar_select %p30, %s32, %s23
      %p34 = scmp.ge.s32.totalorder %s33, 1
      %s35 = scalar_select %p34, 0, %s33
      %s36 = ssub.s32 %s24, %s31
      %s37 = ssub.s32 %s23, %s35
      %s38 = sor.u32 %s36, %s37
      %p39 = scmp.eq.s32.totalorder %s38, 0
      %s41 = sadd.s32 %s40, 1
      %s42 = scalar_select %p39, %s40, %s41
      %p45 = pneg %p39
      %p46 = scmp.eq.s32.totalorder %s16, 1
      %p47 = por %p45, %p46
      %p48 = scmp.ne.s32.totalorder %s40, %s43
      %p49 = scmp.eq.s32.totalorder %s16, 0
      %p50 = por %p48, %p49
      %p51 = scmp.ne.s32.totalorder %s40, %s43
      %p52 = scmp.eq.s32.totalorder %s21, 1
      %p53 = por %p51, %p52
      %p54 = scmp.ne.s32.totalorder %s43, %s44
      %p55 = scmp.eq.s32.totalorder %s21, 0
      %p56 = por %p54, %p55
      %p57 = scmp.ne.s32.totalorder %s43, %s44
      %p58 = scmp.eq.s32.totalorder %s22, 1
      %p59 = por %p57, %p58
      %p61 = scmp.ne.s32.totalorder %s44, %s60
      %p62 = scmp.eq.s32.totalorder %s22, 0
      %p63 = por %p61, %p62
      %s64 = ssub.s32 %s24, %s31
      %p65 = scmp.eq.s32.totalorder %s64, 0
      %s67 = sadd.s32 %s66, 1
      %s68 = scalar_select %p65, %s66, %s67
      %p71 = pneg %p65
      %p72 = scmp.eq.s32.totalorder %s16, 1
      %p73 = por %p71, %p72
      %p74 = scmp.ne.s32.totalorder %s66, %s69
      %p75 = scmp.eq.s32.totalorder %s16, 0
      %p76 = por %p74, %p75
      %p77 = scmp.ne.s32.totalorder %s66, %s69
      %p78 = scmp.eq.s32.totalorder %s21, 1
      %p79 = por %p77, %p78
      %p80 = scmp.ne.s32.totalorder %s69, %s70
      %p81 = scmp.eq.s32.totalorder %s21, 0
      %p82 = por %p80, %p81
      %p83 = scmp.ne.s32.totalorder %s69, %s70
      %p84 = scmp.eq.s32.totalorder %s22, 1
      %p85 = por %p83, %p84
      %p87 = scmp.ne.s32.totalorder %s70, %s86
      %p88 = scmp.eq.s32.totalorder %s22, 0
      %p89 = por %p87, %p88
      %s90 = ssub.s32 %s24, %s31
      %p91 = scmp.eq.s32.totalorder %s90, 0
      %s93 = sadd.s32 %s92, 1
      %s94 = scalar_select %p91, %s92, %s93
      %p97 = pneg %p91
      %p98 = scmp.eq.s32.totalorder %s16, 1
      %p99 = por %p97, %p98
      %p100 = scmp.ne.s32.totalorder %s92, %s95
      %p101 = scmp.eq.s32.totalorder %s16, 0
      %p102 = por %p100, %p101
      %p103 = scmp.ne.s32.totalorder %s92, %s95
      %p104 = scmp.eq.s32.totalorder %s21, 1
      %p105 = por %p103, %p104
      %p106 = scmp.ne.s32.totalorder %s95, %s96
      %p107 = scmp.eq.s32.totalorder %s21, 0
      %p108 = por %p106, %p107
      %p109 = scmp.ne.s32.totalorder %s95, %s96
      %p110 = scmp.eq.s32.totalorder %s22, 1
      %p111 = por %p109, %p110
      %p113 = scmp.ne.s32.totalorder %s96, %s112
      %p114 = scmp.eq.s32.totalorder %s22, 0
      %p115 = por %p113, %p114
      %s116 = ssub.s32 %s23, %s35
      %p117 = scmp.eq.s32.totalorder %s116, 0
      %s119 = sadd.s32 %s118, 1
      %s120 = scalar_select %p117, %s118, %s119
      %p123 = pneg %p117
      %p124 = scmp.eq.s32.totalorder %s16, 1
      %p125 = por %p123, %p124
      %p126 = scmp.ne.s32.totalorder %s118, %s121
      %p127 = scmp.eq.s32.totalorder %s16, 0
      %p128 = por %p126, %p127
      %p129 = scmp.ne.s32.totalorder %s118, %s121
      %p130 = scmp.eq.s32.totalorder %s21, 1
      %p131 = por %p129, %p130
      %p132 = scmp.ne.s32.totalorder %s121, %s122
      %p133 = scmp.eq.s32.totalorder %s21, 0
      %p134 = por %p132, %p133
      %p135 = scmp.ne.s32.totalorder %s121, %s122
      %p136 = scmp.eq.s32.totalorder %s22, 1
      %p137 = por %p135, %p136
      %p139 = scmp.ne.s32.totalorder %s122, %s138
      %p140 = scmp.eq.s32.totalorder %s22, 0
      %p141 = por %p139, %p140
      %p142 = scmp.le.s32.totalorder 1, %s16
      %p143 = scmp.lt.s32.totalorder %s16, 3
      %p144 = pnand %p142, %p143
      %p145 = pneg %p144
      // Predicated region
      $region9: #{tpu_custom_call.1} parent=5 // pred_check
        _
      $region10: #{tpu_custom_call.1} parent=5 // pred_check_branch
        %147 = sbr.rel (%p144) target = $region12
      $region11: #{tpu_custom_call.1} parent=5 // pred_region
        %s148 = ssub.s32 %s16, 1
      $region12: #{tpu_custom_call.1} parent=5 // pred_fallthru
        _
      %p149 = scmp.lt.s32.totalorder %s16, 2
      // Predicated region
      $region13: #{tpu_custom_call.1} parent=5 // pred_check
        %p150 = pneg %p149
      $region14: #{tpu_custom_call.1} parent=5 // pred_check_branch
        %152 = sbr.rel (%p150) target = $region16
      $region15: #{tpu_custom_call.1} parent=5 // pred_region
        // Predicated region
        $region17: #{tpu_custom_call.1} parent=15 // pred_check
          %p153 = pneg %p50
        $region18: #{tpu_custom_call.1} parent=15 // pred_check_branch
          %155 = sbr.rel (%p153) target = $region20
        $region19: #{tpu_custom_call.1} parent=15 // pred_region
          %s156 = sand.u32 %s40, 1
          %s157 = scalar_lea.sflag [#allocation4], %s156
          %s158 = sand.u32 %s40, 1
          %s159 = smul.addr %s158, 32
          %s160 = scalar_lea.vmem [#allocation3], %s159
          %s161 = smul.u32 8, %s23
          %163 = vsyncadd %s157, 0
          %s164 = smul.addr %s24, 8
          %s165 = sadd.s32 %s161, %s164
          %s166 = smul.addr %s165, 4
          %s167 = scalar_lea.hbm %s0, %s166
          %s168 = sshll.u32 %s167, 4
          %s169 = int_to_ptr.hbm [resolvable:$true] %s168
          %s170 = sshll.u32 %s160, 4
          %s171 = int_to_ptr.vmem [resolvable:$true] %s170
          %176 = dma.hbm_to_vmem [thread:$0]  %s169, 512, %s171, %s157, 64, 64, 4
        $region20: #{tpu_custom_call.1} parent=15 // pred_fallthru
          _
        // Predicated region
        $region21: #{tpu_custom_call.1} parent=15 // pred_check
          %p177 = pneg %p76
        $region22: #{tpu_custom_call.1} parent=15 // pred_check_branch
          %179 = sbr.rel (%p177) target = $region24
        $region23: #{tpu_custom_call.1} parent=15 // pred_region
          %s180 = sand.u32 %s16, 1
          %s181 = scalar_lea.sflag [#allocation7], %s180
          %s182 = sand.u32 %s66, 1
          %s183 = smul.addr %s182, 32
          %s184 = scalar_lea.vmem [#allocation6], %s183
          %186 = vsyncadd %s181, 0
          %s187 = smul.addr %s24, 8
          %s188 = smul.addr %s187, 4
          %s189 = scalar_lea.hbm %s1, %s188
          %s190 = sshll.u32 %s189, 4
          %s191 = int_to_ptr.hbm [resolvable:$true] %s190
          %s192 = sshll.u32 %s184, 4
          %s193 = int_to_ptr.vmem [resolvable:$true] %s192
          %198 = dma.hbm_to_vmem [thread:$0]  %s191, 512, %s193, %s181, 64, 64, 4
        $region24: #{tpu_custom_call.1} parent=15 // pred_fallthru
          _
        // Predicated region
        $region25: #{tpu_custom_call.1} parent=15 // pred_check
          %p199 = pneg %p102
        $region26: #{tpu_custom_call.1} parent=15 // pred_check_branch
          %201 = sbr.rel (%p199) target = $region28
        $region27: #{tpu_custom_call.1} parent=15 // pred_region
          %s202 = sand.u32 %s16, 1
          %s203 = scalar_lea.sflag [#allocation7], %s202
          %s204 = sand.u32 %s92, 1
          %s205 = smul.addr %s204, 64
          %s206 = scalar_lea.vmem [#allocation8], %s205
          %208 = vsyncadd %s203, 0
          %s209 = smul.addr %s24, 16
          %s210 = smul.addr %s209, 4
          %s211 = scalar_lea.hbm %s2, %s210
          %s212 = sshll.u32 %s211, 4
          %s213 = int_to_ptr.hbm [resolvable:$true] %s212
          %s214 = sshll.u32 %s206, 4
          %s215 = int_to_ptr.vmem [resolvable:$true] %s214
          %220 = dma.hbm_to_vmem [thread:$0]  %s213, 1024, %s215, %s203, 64, 64, 4
        $region28: #{tpu_custom_call.1} parent=15 // pred_fallthru
          _
      $region16: #{tpu_custom_call.1} parent=5 // pred_fallthru
        _
      %p221 = scmp.le.s32.totalorder 1, %s16
      %p222 = scmp.lt.s32.totalorder %s16, 3
      %p223 = pnand %p221, %p222
      %p224 = pneg %p223
      // Predicated region
      $region29: #{tpu_custom_call.1} parent=5 // pred_check
        _
      $region30: #{tpu_custom_call.1} parent=5 // pred_check_branch
        %226 = sbr.rel (%p223) target = $region32
      $region31: #{tpu_custom_call.1} parent=5 // pred_region
        %s227 = ssub.s32 %s16, 1
        %s228 = sand.u32 %s43, 1
        %s229 = scalar_lea.sflag [#allocation4], %s228
        %s230 = sand.u32 %s43, 1
        %s231 = smul.addr %s230, 32
        %s232 = scalar_lea.vmem [#allocation3], %s231
        // Predicated region
        $region33: #{tpu_custom_call.1} parent=31 // pred_check
          %p233 = pneg %p56
        $region34: #{tpu_custom_call.1} parent=31 // pred_check_branch
          %235 = sbr.rel (%p233) target = $region36
        $region35: #{tpu_custom_call.1} parent=31 // pred_region
          %237 = dma.done %s229, 512
        $region36: #{tpu_custom_call.1} parent=31 // pred_fallthru
          _
        %s238 = sand.u32 %s21, 1
        %s239 = scalar_lea.sflag [#allocation7], %s238
        %s240 = sand.u32 %s69, 1
        %s241 = smul.addr %s240, 32
        %s242 = scalar_lea.vmem [#allocation6], %s241
        // Predicated region
        $region37: #{tpu_custom_call.1} parent=31 // pred_check
          %p243 = pneg %p82
        $region38: #{tpu_custom_call.1} parent=31 // pred_check_branch
          %245 = sbr.rel (%p243) target = $region40
        $region39: #{tpu_custom_call.1} parent=31 // pred_region
          %247 = dma.done %s239, 512
        $region40: #{tpu_custom_call.1} parent=31 // pred_fallthru
          _
        %s248 = sand.u32 %s21, 1
        %s249 = scalar_lea.sflag [#allocation7], %s248
        %s250 = sand.u32 %s95, 1
        %s251 = smul.addr %s250, 64
        %s252 = scalar_lea.vmem [#allocation8], %s251
        // Predicated region
        $region41: #{tpu_custom_call.1} parent=31 // pred_check
          %p253 = pneg %p108
        $region42: #{tpu_custom_call.1} parent=31 // pred_check_branch
          %255 = sbr.rel (%p253) target = $region44
        $region43: #{tpu_custom_call.1} parent=31 // pred_region
          %257 = dma.done %s249, 1024
        $region44: #{tpu_custom_call.1} parent=31 // pred_fallthru
          _
        %s258 = sand.u32 %s43, 1
        %s259 = scalar_lea.sflag [#allocation4], %s258
        %s260 = sand.u32 %s43, 1
        %s261 = smul.addr %s260, 32
        %s262 = scalar_lea.vmem [#allocation3], %s261
        %p263 = pneg %p56
        %p264 = pneg %p53
        %s265 = sand.u32 %s21, 1
        %s266 = scalar_lea.sflag [#allocation7], %s265
        %s267 = sand.u32 %s69, 1
        %s268 = smul.addr %s267, 32
        %s269 = scalar_lea.vmem [#allocation6], %s268
        %p270 = pneg %p82
        %p271 = pneg %p79
        %s272 = sand.u32 %s21, 1
        %s273 = scalar_lea.sflag [#allocation7], %s272
        %s274 = sand.u32 %s95, 1
        %s275 = smul.addr %s274, 64
        %s276 = scalar_lea.vmem [#allocation8], %s275
        %p277 = pneg %p108
        %p278 = pneg %p105
        %p279 = pneg %p134
        %p280 = pneg %p131
        %s281 = smul.u32 8, %s25
        %s282 = smul.u32 8, %s25
        %p284 = scmp.eq.s32.totalorder %s26, 0
        // Predicated region
        $region45: #{tpu_custom_call.1} parent=31 // pred_check
          %p285 = pneg %p284
        $region46: #{tpu_custom_call.1} parent=31 // pred_check_branch
          %287 = sbr.rel (%p285) target = $region48
        $region47: #{tpu_custom_call.1} parent=31 // pred_region
          %288 = vst [vmem:[#allocation2] sm:$0xff] 0.0
          %289 = vst [vmem:[#allocation2 + $0x8] sm:$0xff] 0.0
          %290 = vst [vmem:[#allocation2 + $0x10] sm:$0xff] 0.0
          %291 = vst [vmem:[#allocation2 + $0x18] sm:$0xff] 0.0
          %292 = vst [vmem:[#allocation2 + $0x20] sm:$0xff] 0.0
          %293 = vst [vmem:[#allocation2 + $0x28] sm:$0xff] 0.0
          %294 = vst [vmem:[#allocation2 + $0x30] sm:$0xff] 0.0
          %295 = vst [vmem:[#allocation2 + $0x38] sm:$0xff] 0.0
        $region48: #{tpu_custom_call.1} parent=31 // pred_fallthru
          _
        %v296 = vld [vmem:[%s242] sm:$0xf]
        %v297 = vld [vmem:[%s242 + $0x4] sm:$0xf]
        %v298 = vld [vmem:[%s242 + $0x8] sm:$0xf]
        %v299 = vld [vmem:[%s242 + $0xc] sm:$0xf]
        %v300 = vld [vmem:[%s242 + $0x10] sm:$0xf]
        %v301 = vld [vmem:[%s242 + $0x14] sm:$0xf]
        %v302 = vld [vmem:[%s242 + $0x18] sm:$0xf]
        %v303 = vld [vmem:[%s242 + $0x1c] sm:$0xf]
        %v304 = vld [vmem:[%s252] sm:$0xf]
        %v305 = vld [vmem:[%s252 + $0x4] sm:$0xf]
        %v306 = vld [vmem:[%s252 + $0x8] sm:$0xf]
        %v307 = vld [vmem:[%s252 + $0xc] sm:$0xf]
        %v308 = vld [vmem:[%s252 + $0x10] sm:$0xf]
        %v309 = vld [vmem:[%s252 + $0x14] sm:$0xf]
        %v310 = vld [vmem:[%s252 + $0x18] sm:$0xf]
        %v311 = vld [vmem:[%s252 + $0x1c] sm:$0xf]
        %v312 = vld [vmem:[%s252 + $0x20] sm:$0xf]
        %v313 = vld [vmem:[%s252 + $0x24] sm:$0xf]
        %v314 = vld [vmem:[%s252 + $0x28] sm:$0xf]
        %v315 = vld [vmem:[%s252 + $0x2c] sm:$0xf]
        %v316 = vld [vmem:[%s252 + $0x30] sm:$0xf]
        %v317 = vld [vmem:[%s252 + $0x34] sm:$0xf]
        %v318 = vld [vmem:[%s252 + $0x38] sm:$0xf]
        %v319 = vld [vmem:[%s252 + $0x3c] sm:$0xf]
        %v328 = vunpack.c.l.b16 %v296
        %v329 = vunpack.c.l.b16 %v297
        %v330 = vunpack.c.l.b16 %v298
        %v331 = vunpack.c.l.b16 %v299
        %v332 = vunpack.c.l.b16 %v300
        %v333 = vunpack.c.l.b16 %v301
        %v334 = vunpack.c.l.b16 %v302
        %v335 = vunpack.c.l.b16 %v303
        %v336 = vpack.c.b16 %v329, %v328
        %v337 = vpack.c.b16 %v331, %v330
        %v338 = vpack.c.b16 %v333, %v332
        %v339 = vpack.c.b16 %v335, %v334
        %v360 = vunpack.c.l.b16 %v304
        %v361 = vunpack.c.l.b16 %v305
        %v362 = vunpack.c.l.b16 %v306
        %v363 = vunpack.c.l.b16 %v307
        %v364 = vunpack.c.l.b16 %v308
        %v365 = vunpack.c.l.b16 %v309
        %v366 = vunpack.c.l.b16 %v310
        %v367 = vunpack.c.l.b16 %v311
        %v368 = vunpack.c.l.b16 %v312
        %v369 = vunpack.c.l.b16 %v313
        %v370 = vunpack.c.l.b16 %v314
        %v371 = vunpack.c.l.b16 %v315
        %v372 = vunpack.c.l.b16 %v316
        %v373 = vunpack.c.l.b16 %v317
        %v374 = vunpack.c.l.b16 %v318
        %v375 = vunpack.c.l.b16 %v319
        %v376 = vpack.c.b16 %v361, %v360
        %v377 = vpack.c.b16 %v363, %v362
        %v378 = vpack.c.b16 %v365, %v364
        %v379 = vpack.c.b16 %v367, %v366
        %v380 = vpack.c.b16 %v369, %v368
        %v381 = vpack.c.b16 %v371, %v370
        %v382 = vpack.c.b16 %v373, %v372
        %v383 = vpack.c.b16 %v375, %v374
        %392 = vmatpush.bf16.msra.mxu0 %v383
        %393 = vmatpush.bf16.msra.mxu0 %v382
        %394 = vmatpush.bf16.msra.mxu0 %v381
        %395 = vmatpush.bf16.msra.mxu0 %v380
        %396 = vmatpush.bf16.msra.mxu0 %v379
        %397 = vmatpush.bf16.msra.mxu0 %v378
        %398 = vmatpush.bf16.msra.mxu0 %v377
        %399 = vmatpush.bf16.msra.mxu0 %v376
        %400 = vmatmul.bf16.gmra.mxu0 %v336
        %v401 = vpop.f32.mrf.mxu0
        %v402 = vadd.f32 0.0, %v401
        %v403 = vpop.f32.mrf.mxu0
        %v404 = vadd.f32 0.0, %v403
        %405 = vmatmul.bf16.gmra.mxu0 %v337
        %v406 = vpop.f32.mrf.mxu0
        %v407 = vadd.f32 0.0, %v406
        %v408 = vpop.f32.mrf.mxu0
        %v409 = vadd.f32 0.0, %v408
        %410 = vmatmul.bf16.gmra.mxu0 %v338
        %v411 = vpop.f32.mrf.mxu0
        %v412 = vadd.f32 0.0, %v411
        %v413 = vpop.f32.mrf.mxu0
        %v414 = vadd.f32 0.0, %v413
        %415 = vmatmul.bf16.gmra.mxu0 %v339
        %v416 = vpop.f32.mrf.mxu0
        %v417 = vadd.f32 0.0, %v416
        %v418 = vpop.f32.mrf.mxu0
        %v419 = vadd.f32 0.0, %v418
        %420 = vdwg.mxu0
        %v421 = vld [vmem:[%s232] sm:$0xf]
        %v422 = vld [vmem:[%s232 + $0x4] sm:$0xf]
        %v423 = vld [vmem:[%s232 + $0x8] sm:$0xf]
        %v424 = vld [vmem:[%s232 + $0xc] sm:$0xf]
        %v425 = vld [vmem:[%s232 + $0x10] sm:$0xf]
        %v426 = vld [vmem:[%s232 + $0x14] sm:$0xf]
        %v427 = vld [vmem:[%s232 + $0x18] sm:$0xf]
        %v428 = vld [vmem:[%s232 + $0x1c] sm:$0xf]
        %v429 = vpack.c.bf16 %v404, %v402
        %v430 = vpack.c.bf16 %v409, %v407
        %v431 = vpack.c.bf16 %v414, %v412
        %v432 = vpack.c.bf16 %v419, %v417
        %v441 = vunpack.c.l.b16 %v421
        %v442 = vunpack.c.l.b16 %v422
        %v443 = vunpack.c.l.b16 %v423
        %v444 = vunpack.c.l.b16 %v424
        %v445 = vunpack.c.l.b16 %v425
        %v446 = vunpack.c.l.b16 %v426
        %v447 = vunpack.c.l.b16 %v427
        %v448 = vunpack.c.l.b16 %v428
        %v449 = vpack.c.b16 %v442, %v441
        %v450 = vpack.c.b16 %v444, %v443
        %v451 = vpack.c.b16 %v446, %v445
        %v452 = vpack.c.b16 %v448, %v447
        %vm453 = vcmask 523264
        %v455 = vsel %vm453, %v449, 0
        %v458 = vsel %vm453, %v450, 0
        %v461 = vsel %vm453, %v451, 0
        %v464 = vsel %vm453, %v452, 0
        %466 = vmatpush.bf16.msra.mxu0 0
        %467 = vmatpush.bf16.msra.mxu0 0
        %468 = vmatpush.bf16.msra.mxu0 0
        %469 = vmatpush.bf16.msra.mxu0 0
        %470 = vmatpush.bf16.msra.mxu0 %v432
        %471 = vmatpush.bf16.msra.mxu0 %v431
        %472 = vmatpush.bf16.msra.mxu0 %v430
        %473 = vmatpush.bf16.msra.mxu0 %v429
        %474 = vmatmul.bf16.gmra.mxu0 %v455
        %v475 = vpop.f32.mrf.mxu0
        %v476 = vadd.f32 0.0, %v475
        %v477 = vpop.f32.mrf.mxu0
        %v478 = vadd.f32 0.0, %v477
        %479 = vmatmul.bf16.gmra.mxu0 %v458
        %v480 = vpop.f32.mrf.mxu0
        %v481 = vadd.f32 0.0, %v480
        %v482 = vpop.f32.mrf.mxu0
        %v483 = vadd.f32 0.0, %v482
        %484 = vmatmul.bf16.gmra.mxu0 %v461
        %v485 = vpop.f32.mrf.mxu0
        %v486 = vadd.f32 0.0, %v485
        %v487 = vpop.f32.mrf.mxu0
        %v488 = vadd.f32 0.0, %v487
        %489 = vmatmul.bf16.gmra.mxu0 %v464
        %v490 = vpop.f32.mrf.mxu0
        %v491 = vadd.f32 0.0, %v490
        %v492 = vpop.f32.mrf.mxu0
        %v493 = vadd.f32 0.0, %v492
        %494 = vdwg.mxu0
        %v495 = vld [vmem:[#allocation2] sm:$0xff]
        %v496 = vld [vmem:[#allocation2 + $0x8] sm:$0xff]
        %v497 = vld [vmem:[#allocation2 + $0x10] sm:$0xff]
        %v498 = vld [vmem:[#allocation2 + $0x18] sm:$0xff]
        %v499 = vld [vmem:[#allocation2 + $0x20] sm:$0xff]
        %v500 = vld [vmem:[#allocation2 + $0x28] sm:$0xff]
        %v501 = vld [vmem:[#allocation2 + $0x30] sm:$0xff]
        %v502 = vld [vmem:[#allocation2 + $0x38] sm:$0xff]
        %v503 = vmax.f32 %v476, 0.0
        %v504 = vmax.f32 %v478, 0.0
        %v505 = vmax.f32 %v481, 0.0
        %v506 = vmax.f32 %v483, 0.0
        %v507 = vmax.f32 %v486, 0.0
        %v508 = vmax.f32 %v488, 0.0
        %v509 = vmax.f32 %v491, 0.0
        %v510 = vmax.f32 %v493, 0.0
        %v511 = vadd.f32 %v495, %v503
        %v512 = vadd.f32 %v496, %v504
        %v513 = vadd.f32 %v497, %v505
        %v514 = vadd.f32 %v498, %v506
        %v515 = vadd.f32 %v499, %v507
        %v516 = vadd.f32 %v500, %v508
        %v517 = vadd.f32 %v501, %v509
        %v518 = vadd.f32 %v502, %v510
        %519 = vst [vmem:[#allocation2] sm:$0xff] %v511
        %520 = vst [vmem:[#allocation2 + $0x8] sm:$0xff] %v512
        %521 = vst [vmem:[#allocation2 + $0x10] sm:$0xff] %v513
        %522 = vst [vmem:[#allocation2 + $0x18] sm:$0xff] %v514
        %523 = vst [vmem:[#allocation2 + $0x20] sm:$0xff] %v515
        %524 = vst [vmem:[#allocation2 + $0x28] sm:$0xff] %v516
        %525 = vst [vmem:[#allocation2 + $0x30] sm:$0xff] %v517
        %526 = vst [vmem:[#allocation2 + $0x38] sm:$0xff] %v518
        %p527 = scmp.eq.s32.totalorder %s26, 1
        // Predicated region
        $region49: #{tpu_custom_call.1} parent=31 // pred_check
          %p528 = pneg %p527
        $region50: #{tpu_custom_call.1} parent=31 // pred_check_branch
          %530 = sbr.rel (%p528) target = $region52
        $region51: #{tpu_custom_call.1} parent=31 // pred_region
          %v531 = vld [vmem:[#allocation2] sm:$0xff]
          %v532 = vld [vmem:[#allocation2 + $0x8] sm:$0xff]
          %v533 = vld [vmem:[#allocation2 + $0x10] sm:$0xff]
          %v534 = vld [vmem:[#allocation2 + $0x18] sm:$0xff]
          %v535 = vld [vmem:[#allocation2 + $0x20] sm:$0xff]
          %v536 = vld [vmem:[#allocation2 + $0x28] sm:$0xff]
          %v537 = vld [vmem:[#allocation2 + $0x30] sm:$0xff]
          %v538 = vld [vmem:[#allocation2 + $0x38] sm:$0xff]
          %v539 = vmul.f32 %v531, %v531
          %v540 = vmul.f32 %v532, %v532
          %v541 = vmul.f32 %v533, %v533
          %v542 = vmul.f32 %v534, %v534
          %v543 = vmul.f32 %v535, %v535
          %v544 = vmul.f32 %v536, %v536
          %v545 = vmul.f32 %v537, %v537
          %v546 = vmul.f32 %v538, %v538
          %547 = vadd.xlane.f32.xlu0 %v539
          %v548 = vpop.xlane.xlu0 %547
          %549 = vadd.xlane.f32.xlu0 %v540
          %v550 = vpop.xlane.xlu0 %549
          %551 = vadd.xlane.f32.xlu0 %v541
          %v552 = vpop.xlane.xlu0 %551
          %553 = vadd.xlane.f32.xlu0 %v542
          %v554 = vpop.xlane.xlu0 %553
          %555 = vadd.xlane.f32.xlu0 %v543
          %v556 = vpop.xlane.xlu0 %555
          %557 = vadd.xlane.f32.xlu0 %v544
          %v558 = vpop.xlane.xlu0 %557
          %559 = vadd.xlane.f32.xlu0 %v545
          %v560 = vpop.xlane.xlu0 %559
          %561 = vadd.xlane.f32.xlu0 %v546
          %v562 = vpop.xlane.xlu0 %561
          %v563 = vmax.f32 %v548, 1e-24
          %v564 = vmax.f32 %v550, 1e-24
          %v565 = vmax.f32 %v552, 1e-24
          %v566 = vmax.f32 %v554, 1e-24
          %v567 = vmax.f32 %v556, 1e-24
          %v568 = vmax.f32 %v558, 1e-24
          %v569 = vmax.f32 %v560, 1e-24
          %v570 = vmax.f32 %v562, 1e-24
          %v571 = vrsqrt.pop %v563
          %v572 = vmul.f32 %v571, %v563
          %v573 = vmul.f32 %v572, %v571
          %v574 = vmul.f32 0.5, %v573
          %v575 = vsub.f32 1.5, %v574
          %v576 = vmul.f32 %v571, %v575
          %vm577 = vweird.f32 %v563
          %vm578 = vweird.f32 %v571
          %vm579 = vmor %vm577, %vm578
          %v580 = vsel %vm579, %v571, %v576
          %v581 = vrsqrt.pop %v564
          %v582 = vmul.f32 %v581, %v564
          %v583 = vmul.f32 %v582, %v581
          %v584 = vmul.f32 0.5, %v583
          %v585 = vsub.f32 1.5, %v584
          %v586 = vmul.f32 %v581, %v585
          %vm587 = vweird.f32 %v564
          %vm588 = vweird.f32 %v581
          %vm589 = vmor %vm587, %vm588
          %v590 = vsel %vm589, %v581, %v586
          %v591 = vrsqrt.pop %v565
          %v592 = vmul.f32 %v591, %v565
          %v593 = vmul.f32 %v592, %v591
          %v594 = vmul.f32 0.5, %v593
          %v595 = vsub.f32 1.5, %v594
          %v596 = vmul.f32 %v591, %v595
          %vm597 = vweird.f32 %v565
          %vm598 = vweird.f32 %v591
          %vm599 = vmor %vm597, %vm598
          %v600 = vsel %vm599, %v591, %v596
          %v601 = vrsqrt.pop %v566
          %v602 = vmul.f32 %v601, %v566
          %v603 = vmul.f32 %v602, %v601
          %v604 = vmul.f32 0.5, %v603
          %v605 = vsub.f32 1.5, %v604
          %v606 = vmul.f32 %v601, %v605
          %vm607 = vweird.f32 %v566
          %vm608 = vweird.f32 %v601
          %vm609 = vmor %vm607, %vm608
          %v610 = vsel %vm609, %v601, %v606
          %v611 = vrsqrt.pop %v567
          %v612 = vmul.f32 %v611, %v567
          %v613 = vmul.f32 %v612, %v611
          %v614 = vmul.f32 0.5, %v613
          %v615 = vsub.f32 1.5, %v614
          %v616 = vmul.f32 %v611, %v615
          %vm617 = vweird.f32 %v567
          %vm618 = vweird.f32 %v611
          %vm619 = vmor %vm617, %vm618
          %v620 = vsel %vm619, %v611, %v616
          %v621 = vrsqrt.pop %v568
          %v622 = vmul.f32 %v621, %v568
          %v623 = vmul.f32 %v622, %v621
          %v624 = vmul.f32 0.5, %v623
          %v625 = vsub.f32 1.5, %v624
          %v626 = vmul.f32 %v621, %v625
          %vm627 = vweird.f32 %v568
          %vm628 = vweird.f32 %v621
          %vm629 = vmor %vm627, %vm628
          %v630 = vsel %vm629, %v621, %v626
          %v631 = vrsqrt.pop %v569
          %v632 = vmul.f32 %v631, %v569
          %v633 = vmul.f32 %v632, %v631
          %v634 = vmul.f32 0.5, %v633
          %v635 = vsub.f32 1.5, %v634
          %v636 = vmul.f32 %v631, %v635
          %vm637 = vweird.f32 %v569
          %vm638 = vweird.f32 %v631
          %vm639 = vmor %vm637, %vm638
          %v640 = vsel %vm639, %v631, %v636
          %v641 = vrsqrt.pop %v570
          %v642 = vmul.f32 %v641, %v570
          %v643 = vmul.f32 %v642, %v641
          %v644 = vmul.f32 0.5, %v643
          %v645 = vsub.f32 1.5, %v644
          %v646 = vmul.f32 %v641, %v645
          %vm647 = vweird.f32 %v570
          %vm648 = vweird.f32 %v641
          %vm649 = vmor %vm647, %vm648
          %v650 = vsel %vm649, %v641, %v646
          %v651 = vmul.f32 %v531, %v580
          %v652 = vmul.f32 %v532, %v590
          %v653 = vmul.f32 %v533, %v600
          %v654 = vmul.f32 %v534, %v610
          %v655 = vmul.f32 %v535, %v620
          %v656 = vmul.f32 %v536, %v630
          %v657 = vmul.f32 %v537, %v640
          %v658 = vmul.f32 %v538, %v650
          %659 = vst [vmem:[#allocation9] sm:$0xff] %v651
          %660 = vst [vmem:[#allocation9 + $0x8] sm:$0xff] %v652
          %661 = vst [vmem:[#allocation9 + $0x10] sm:$0xff] %v653
          %662 = vst [vmem:[#allocation9 + $0x18] sm:$0xff] %v654
          %663 = vst [vmem:[#allocation9 + $0x20] sm:$0xff] %v655
          %664 = vst [vmem:[#allocation9 + $0x28] sm:$0xff] %v656
          %665 = vst [vmem:[#allocation9 + $0x30] sm:$0xff] %v657
          %666 = vst [vmem:[#allocation9 + $0x38] sm:$0xff] %v658
        $region52: #{tpu_custom_call.1} parent=31 // pred_fallthru
          _
        // Predicated region
        $region53: #{tpu_custom_call.1} parent=31 // pred_check
          %p667 = pneg %p131
        $region54: #{tpu_custom_call.1} parent=31 // pred_check_branch
          %669 = sbr.rel (%p667) target = $region56
        $region55: #{tpu_custom_call.1} parent=31 // pred_region
          %s670 = smul.u32 8, %s25
          %672 = vsyncadd [#allocation5], 0
          %s673 = smul.addr %s670, 8
          %s674 = scalar_lea.hbm %s3, %s673
          %s675 = sshll.u32 [#allocation9], 4
          %s676 = int_to_ptr.vmem [resolvable:$true] %s675
          %s677 = sshll.u32 %s674, 4
          %s678 = int_to_ptr.hbm [resolvable:$true] %s677
          %683 = dma.vmem_to_hbm [thread:$0]  %s676, 1024, %s678, [#allocation5], 128, 128, 8
        $region56: #{tpu_custom_call.1} parent=31 // pred_fallthru
          _
        // Predicated region
        $region57: #{tpu_custom_call.1} parent=31 // pred_check
          %p684 = pneg %p131
        $region58: #{tpu_custom_call.1} parent=31 // pred_check_branch
          %686 = sbr.rel (%p684) target = $region60
        $region59: #{tpu_custom_call.1} parent=31 // pred_region
          %688 = dma.done [#allocation5], 1024
        $region60: #{tpu_custom_call.1} parent=31 // pred_fallthru
          _
      $region32: #{tpu_custom_call.1} parent=5 // pred_fallthru
        _
      %p689 = scmp.le.s32.totalorder 2, %s16
      // Predicated region
      $region61: #{tpu_custom_call.1} parent=5 // pred_check
        %p690 = pneg %p689
      $region62: #{tpu_custom_call.1} parent=5 // pred_check_branch
        %692 = sbr.rel (%p690) target = $region64
      $region63: #{tpu_custom_call.1} parent=5 // pred_region
        %s693 = ssub.s32 %s16, 2
      $region64: #{tpu_custom_call.1} parent=5 // pred_fallthru
        _
    $region6: #{tpu_custom_call.1} parent=1 // loop_footer
      %s20 = sadd.s32 1, %s16
    $region7: #{tpu_custom_call.1} parent=1 // loop_footer_branch
      %15 = sbr.rel target = $region3
    $region8: #{tpu_custom_call.1} parent=1 // loop_exit
      _
    %694 = vsyncpa [#allocation4], 1
    %s695 = scalar_lea.sflag [#allocation4], 1
    %696 = vsyncpa %s695, 1
    %697 = vsyncpa [#allocation7], 1
    %s698 = scalar_lea.sflag [#allocation7], 1
    %699 = vsyncpa %s698, 1
    %700 = vsyncpa [#allocation5], 1
    %s701 = scalar_lea.sflag [#allocation5], 1
    %702 = vsyncpa %s701, 1

</llo_original>
